<compile_context>
chip_gen: v7x
topology: tpu7x:2x2x1
jax: 0.10.0
libtpu: 0.0.40
codegen_flags: <defaults>
</compile_context>

<pallas_src>
import functools

import numpy as np
import jax
import jax.numpy as jnp
from jax.experimental import pallas as pl
from jax.experimental.pallas import tpu as pltpu

# ---- packed-parameter slab layout (all sections 128 lanes wide) -------------
G = 32                         # lanes per gate (requires hidden_size <= 32)
LANES = 4 * G                  # 128
FC1_DIM = 128                  # fc_1 output width (fixed by the module)
ROW_WIH = 0                    # rows [0, 8):   W_ih^T   (input_size rows used)
ROW_WHH = 8                    # rows [8, 16):  W_hh^T   (hidden_size rows used)
ROW_B = 16                     # row 16: b_ih+b_hh | 17: fc_1 bias | 18: fc bias
ROW_FC1W = 24                  # rows [24, 152): fc_1 weight^T (rows >= H zero)
ROW_FCW = ROW_FC1W + FC1_DIM   # rows [152, 280): fc weight^T (cols >= NC zero)
N_ROWS = ROW_FCW + FC1_DIM     # 280 (multiple of 8)


def lstm1_kernel(x_ref, p_ref, out_ref, *, T, Bp, H, I):
    # x_ref:   (T*Bp, I)    time-major rows (row t*Bp + b), batch zero-padded
    # p_ref:   (N_ROWS,128) packed parameter slab (see layout above)
    # out_ref: (Bp, 128)    lane-dense head output; cols >= NC are zero
    f32 = jnp.float32

    wih = p_ref[ROW_WIH:ROW_WIH + I, :]            # (I, 128)
    whh = p_ref[ROW_WHH:ROW_WHH + H, :]            # (H, 128)
    b_lstm = p_ref[ROW_B:ROW_B + 1, :]             # (1, 128)

    # Hoisted input projection: one matmul covers every timestep (off the
    # serial h-chain); bias folded in.
    xg = jnp.dot(x_ref[...], wih, preferred_element_type=f32) + b_lstm  # (T*Bp,128)

    # Hoisted W_hh row broadcasts (reused by every unrolled timestep).
    whh_b = [jnp.broadcast_to(whh[r:r + 1, :], (Bp, LANES)) for r in range(H)]

    # Lane mask: sigmoid for f/i/o (lanes < 3G), tanh for g (lanes >= 3G).
    lane = jax.lax.broadcasted_iota(jnp.int32, (Bp, LANES), 1)
    sig_mask = lane < 3 * G

    h = jnp.zeros((Bp, LANES), f32)
    c = jnp.zeros((Bp, LANES), f32)
    for t in range(T):                              # T static -> fully unrolled
        gates = xg[t * Bp:(t + 1) * Bp, :]          # (Bp,128), whole (8,128) tiles
        for r in range(H):                          # tiny H -> VPU MACs (MXU off the chain)
            gates = gates + h[:, r:r + 1] * whh_b[r]
        # ONE sigmoid + ONE tanh push over a single vreg, selected per lane.
        act = jnp.where(sig_mask, jax.nn.sigmoid(gates), jnp.tanh(gates))
        # act   = [f | i | o | g]
        # act64 = [o | g | f | i]      (roll by 64 is direction-agnostic)
        act64 = pltpu.roll(act, shift=2 * G, axis=1)
        # act*act64 = [f*o | i*g | o*f | g*i]; rolling by 32 in EITHER direction
        # lands i*g in block 0.
        ig = pltpu.roll(act * act64, shift=G, axis=1)
        c = act * c + ig                            # block 0: f*c + i*g
        h = act64 * jnp.tanh(c)                     # block 0: o*tanh(c)

    # Head: hn.view(-1, H) -> ReLU -> fc_1 -> ReLU -> fc (all lane-dense).
    fc1_w = p_ref[ROW_FC1W:ROW_FC1W + FC1_DIM, :]   # (128,128), rows >= H zero
    fc1_b = p_ref[ROW_B + 1:ROW_B + 2, :]
    fc_w = p_ref[ROW_FCW:ROW_FCW + FC1_DIM, :]      # (128,128), cols >= NC zero
    fc_b = p_ref[ROW_B + 2:ROW_B + 3, :]

    out = jnp.maximum(h, 0.0)
    out = jnp.dot(out, fc1_w, preferred_element_type=f32) + fc1_b
    out = jnp.maximum(out, 0.0)
    out = jnp.dot(out, fc_w, preferred_element_type=f32) + fc_b
    out_ref[...] = out.astype(out_ref.dtype)


def pack_params(params):
    """One-time host-side packing of all parameters into a single slab."""
    H = params["w_hh"].shape[1]
    I = params["w_ih"].shape[1]
    FC1 = params["fc1_w"].shape[0]
    NC = params["fc_w"].shape[0]
    assert H <= 8 and I <= 8 and FC1 == FC1_DIM and NC <= LANES

    def gate_blocks(w):
        # PyTorch row order [i, f, g, o] -> kernel block order [f, i, o, g]
        i, f, g, o = w[0:H], w[H:2 * H], w[2 * H:3 * H], w[3 * H:4 * H]
        return (f, i, o, g)

    slab = np.zeros((N_ROWS, LANES), np.float32)   # zero padding = the invariant
    for k, blk in enumerate(gate_blocks(np.asarray(params["w_ih"], np.float32))):
        slab[ROW_WIH:ROW_WIH + I, k * G:k * G + H] = blk.T
    for k, blk in enumerate(gate_blocks(np.asarray(params["w_hh"], np.float32))):
        slab[ROW_WHH:ROW_WHH + H, k * G:k * G + H] = blk.T
    b = np.asarray(params["b_ih"] + params["b_hh"], np.float32)
    for k, blk in enumerate(gate_blocks(b)):
        slab[ROW_B, k * G:k * G + H] = blk
    slab[ROW_B + 1, :FC1] = np.asarray(params["fc1_b"], np.float32)
    slab[ROW_B + 2, :NC] = np.asarray(params["fc_b"], np.float32)
    slab[ROW_FC1W:ROW_FC1W + H, :FC1] = np.asarray(params["fc1_w"], np.float32).T
    slab[ROW_FCW:ROW_FCW + FC1, :NC] = np.asarray(params["fc_w"], np.float32).T
    return jnp.asarray(slab), H, I, NC


def make_lstm1_forward(params):
    """Packs parameters once; returns a jitted forward(x) for x: (B, T, I)."""
    slab, H, I, NC = pack_params(params)

    @jax.jit
    def forward(x):
        B, T, _ = x.shape
        Bp = ((B + 7) // 8) * 8                     # full sublane tiles
        x_tm = jnp.transpose(x, (1, 0, 2)).astype(jnp.float32)   # (T, B, I)
        if Bp != B:
            x_tm = jnp.pad(x_tm, ((0, 0), (0, Bp - B), (0, 0)))
        x2d = x_tm.reshape(T * Bp, I)               # time-major rows

        vmem = pl.BlockSpec(memory_space=pltpu.MemorySpace.VMEM)
        out = pl.pallas_call(
            functools.partial(lstm1_kernel, T=T, Bp=Bp, H=H, I=I),
            out_shape=jax.ShapeDtypeStruct((Bp, LANES), jnp.float32),
            in_specs=[vmem, vmem],
            out_specs=vmem,
        )(x2d, slab)
        # TODO(synk): for non-toy B/T, add a ("parallel",) batch / T-chunk grid
        # so x streams HBM->VMEM and v7x's two TensorCores split the work;
        # size those tiles against v7x's 64 MiB VMEM (not v5e/v6e's 128 MiB).
        return out[:B, :NC]

    return forward


def _reference(x, params):
    """Pure-JAX reference of the PyTorch forward pass (for verification)."""
    B, T, I = x.shape
    H = params["w_hh"].shape[1]
    h = jnp.zeros((B, H), jnp.float32)
    c = jnp.zeros((B, H), jnp.float32)
    b = params["b_ih"] + params["b_hh"]
    for t in range(T):
        gates = x[:, t, :] @ params["w_ih"].T + h @ params["w_hh"].T + b
        i_g = jax.nn.sigmoid(gates[:, 0:H])
        f_g = jax.nn.sigmoid(gates[:, H:2 * H])
        g_g = jnp.tanh(gates[:, 2 * H:3 * H])
        o_g = jax.nn.sigmoid(gates[:, 3 * H:4 * H])
        c = f_g * c + i_g * g_g
        h = o_g * jnp.tanh(c)
    out = jnp.maximum(h, 0.0)
    out = out @ params["fc1_w"].T + params["fc1_b"]
    out = jnp.maximum(out, 0.0)
    out = out @ params["fc_w"].T + params["fc_b"]
    return out


def init_params(key, input_size, hidden_size, fc1_dim, num_classes):
    ks = jax.random.split(key, 8)
    k_lstm = 1.0 / jnp.sqrt(hidden_size)
    k_fc1 = 1.0 / jnp.sqrt(hidden_size)
    k_fc = 1.0 / jnp.sqrt(fc1_dim)
    u = lambda k, shape, s: jax.random.uniform(k, shape, jnp.float32, -s, s)
    return {
        "w_ih": u(ks[0], (4 * hidden_size, input_size), k_lstm),
        "w_hh": u(ks[1], (4 * hidden_size, hidden_size), k_lstm),
        "b_ih": u(ks[2], (4 * hidden_size,), k_lstm),
        "b_hh": u(ks[3], (4 * hidden_size,), k_lstm),
        "fc1_w": u(ks[4], (fc1_dim, hidden_size), k_fc1),
        "fc1_b": u(ks[5], (fc1_dim,), k_fc1),
        "fc_w": u(ks[6], (num_classes, fc1_dim), k_fc),
        "fc_b": u(ks[7], (num_classes,), k_fc),
    }


if __name__ == "__main__":
    # Module constants from the script: input_size=5, hidden_size=2,
    # num_layers=1, num_classes=1. Small synthetic batch/seq.
    B, T, I, H, FC1, NC = 2, 8, 5, 2, 128, 1

    key = jax.random.PRNGKey(0)
    k_x, k_p = jax.random.split(key)
    x = jax.random.normal(k_x, (B, T, I), jnp.float32)
    params = init_params(k_p, I, H, FC1, NC)

    forward = make_lstm1_forward(params)        # packing happens once, here
    out = jax.block_until_ready(forward(x))
    ref = _reference(x, params)
    assert out.shape == (B, NC)
    assert jnp.allclose(out, ref, atol=1e-5, rtol=1e-5)
    print("KERNEL_OK")
</pallas_src>

<mosaic_0001>
module attributes {stable_mosaic.version = 11 : i64} {
  func.func @lstm1_kernel(%arg0: memref<64x5xf32, #tpu.memory_space<vmem>>, %arg1: memref<280x128xf32, #tpu.memory_space<vmem>>, %arg2: memref<8x128xf32, #tpu.memory_space<vmem>>) attributes {dimension_semantics = [], scalar_prefetch = 0 : i64, scratch_operands = 0 : i64, tpu.core_type = #tpu.core_type<tc>} {
    %c0 = arith.constant 0 : index
    %c0_0 = arith.constant 0 : index
    %0 = vector.load %arg1[%c0, %c0_0] : memref<280x128xf32, #tpu.memory_space<vmem>>, vector<5x128xf32>
    %c8 = arith.constant 8 : index
    %c0_1 = arith.constant 0 : index
    %1 = vector.load %arg1[%c8, %c0_1] : memref<280x128xf32, #tpu.memory_space<vmem>>, vector<2x128xf32>
    %c16 = arith.constant 16 : index
    %c0_2 = arith.constant 0 : index
    %2 = vector.load %arg1[%c16, %c0_2] : memref<280x128xf32, #tpu.memory_space<vmem>>, vector<1x128xf32>
    %c0_3 = arith.constant 0 : index
    %c0_4 = arith.constant 0 : index
    %3 = vector.load %arg0[%c0_3, %c0_4] : memref<64x5xf32, #tpu.memory_space<vmem>>, vector<64x5xf32>
    %cst = arith.constant dense<0.000000e+00> : vector<64x128xf32>
    %4 = tpu.matmul %3, %0, %cst {dimension_numbers = #tpu.dot_dimension_numbers<[1], [0], [0], [1], [0, 0, 1, 1], [], []>} : vector<64x5xf32>, vector<5x128xf32>, vector<64x128xf32> -> vector<64x128xf32>
    %5 = vector.broadcast %2 : vector<1x128xf32> to vector<64x128xf32>
    %6 = arith.addf %4, %5 : vector<64x128xf32>
    %7 = vector.extract_strided_slice %1 {offsets = [0, 0], sizes = [1, 128], strides = [1, 1]} : vector<2x128xf32> to vector<1x128xf32>
    %8 = vector.shape_cast %7 : vector<1x128xf32> to vector<1x128xf32>
    %9 = vector.broadcast %8 : vector<1x128xf32> to vector<8x128xf32>
    %10 = vector.extract_strided_slice %1 {offsets = [1, 0], sizes = [1, 128], strides = [1, 1]} : vector<2x128xf32> to vector<1x128xf32>
    %11 = vector.shape_cast %10 : vector<1x128xf32> to vector<1x128xf32>
    %12 = vector.broadcast %11 : vector<1x128xf32> to vector<8x128xf32>
    %13 = tpu.iota {dimensions = array<i32: 1>} : vector<8x128xi32>
    %c96_i32 = arith.constant 96 : i32
    %14 = vector.broadcast %c96_i32 : i32 to vector<8x128xi32>
    %15 = arith.cmpi slt, %13, %14 : vector<8x128xi32>
    %cst_5 = arith.constant 0.000000e+00 : f32
    %16 = vector.broadcast %cst_5 : f32 to vector<8x128xf32>
    %cst_6 = arith.constant 0.000000e+00 : f32
    %17 = vector.broadcast %cst_6 : f32 to vector<8x128xf32>
    %18 = vector.extract_strided_slice %6 {offsets = [0, 0], sizes = [8, 128], strides = [1, 1]} : vector<64x128xf32> to vector<8x128xf32>
    %19 = vector.extract_strided_slice %16 {offsets = [0, 0], sizes = [8, 1], strides = [1, 1]} : vector<8x128xf32> to vector<8x1xf32>
    %20 = vector.broadcast %19 : vector<8x1xf32> to vector<8x128xf32>
    %21 = arith.mulf %20, %9 : vector<8x128xf32>
    %22 = arith.addf %18, %21 : vector<8x128xf32>
    %23 = vector.extract_strided_slice %16 {offsets = [0, 1], sizes = [8, 1], strides = [1, 1]} : vector<8x128xf32> to vector<8x1xf32>
    %24 = vector.broadcast %23 : vector<8x1xf32> to vector<8x128xf32>
    %25 = arith.mulf %24, %12 : vector<8x128xf32>
    %26 = arith.addf %22, %25 : vector<8x128xf32>
    %27 = arith.negf %26 : vector<8x128xf32>
    %28 = math.exp %27 : vector<8x128xf32>
    %cst_7 = arith.constant 1.000000e+00 : f32
    %29 = vector.broadcast %cst_7 : f32 to vector<8x128xf32>
    %30 = arith.addf %29, %28 : vector<8x128xf32>
    %31 = arith.divf %29, %30 : vector<8x128xf32>
    %32 = math.tanh %26 : vector<8x128xf32>
    %33 = arith.select %15, %31, %32 : vector<8x128xi1>, vector<8x128xf32>
    %c64_i32 = arith.constant 64 : i32
    %34 = tpu.dynamic_rotate %33 by %c64_i32 dim 1 : vector<8x128xf32>, i32 -> vector<8x128xf32>
    %35 = arith.mulf %33, %34 : vector<8x128xf32>
    %c32_i32 = arith.constant 32 : i32
    %36 = tpu.dynamic_rotate %35 by %c32_i32 dim 1 : vector<8x128xf32>, i32 -> vector<8x128xf32>
    %37 = arith.mulf %33, %17 : vector<8x128xf32>
    %38 = arith.addf %37, %36 : vector<8x128xf32>
    %39 = math.tanh %38 : vector<8x128xf32>
    %40 = arith.mulf %34, %39 : vector<8x128xf32>
    %41 = vector.extract_strided_slice %6 {offsets = [8, 0], sizes = [8, 128], strides = [1, 1]} : vector<64x128xf32> to vector<8x128xf32>
    %42 = vector.extract_strided_slice %40 {offsets = [0, 0], sizes = [8, 1], strides = [1, 1]} : vector<8x128xf32> to vector<8x1xf32>
    %43 = vector.broadcast %42 : vector<8x1xf32> to vector<8x128xf32>
    %44 = arith.mulf %43, %9 : vector<8x128xf32>
    %45 = arith.addf %41, %44 : vector<8x128xf32>
    %46 = vector.extract_strided_slice %40 {offsets = [0, 1], sizes = [8, 1], strides = [1, 1]} : vector<8x128xf32> to vector<8x1xf32>
    %47 = vector.broadcast %46 : vector<8x1xf32> to vector<8x128xf32>
    %48 = arith.mulf %47, %12 : vector<8x128xf32>
    %49 = arith.addf %45, %48 : vector<8x128xf32>
    %50 = arith.negf %49 : vector<8x128xf32>
    %51 = math.exp %50 : vector<8x128xf32>
    %cst_8 = arith.constant 1.000000e+00 : f32
    %52 = vector.broadcast %cst_8 : f32 to vector<8x128xf32>
    %53 = arith.addf %52, %51 : vector<8x128xf32>
    %54 = arith.divf %52, %53 : vector<8x128xf32>
    %55 = math.tanh %49 : vector<8x128xf32>
    %56 = arith.select %15, %54, %55 : vector<8x128xi1>, vector<8x128xf32>
    %c64_i32_9 = arith.constant 64 : i32
    %57 = tpu.dynamic_rotate %56 by %c64_i32_9 dim 1 : vector<8x128xf32>, i32 -> vector<8x128xf32>
    %58 = arith.mulf %56, %57 : vector<8x128xf32>
    %c32_i32_10 = arith.constant 32 : i32
    %59 = tpu.dynamic_rotate %58 by %c32_i32_10 dim 1 : vector<8x128xf32>, i32 -> vector<8x128xf32>
    %60 = arith.mulf %56, %38 : vector<8x128xf32>
    %61 = arith.addf %60, %59 : vector<8x128xf32>
    %62 = math.tanh %61 : vector<8x128xf32>
    %63 = arith.mulf %57, %62 : vector<8x128xf32>
    %64 = vector.extract_strided_slice %6 {offsets = [16, 0], sizes = [8, 128], strides = [1, 1]} : vector<64x128xf32> to vector<8x128xf32>
    %65 = vector.extract_strided_slice %63 {offsets = [0, 0], sizes = [8, 1], strides = [1, 1]} : vector<8x128xf32> to vector<8x1xf32>
    %66 = vector.broadcast %65 : vector<8x1xf32> to vector<8x128xf32>
    %67 = arith.mulf %66, %9 : vector<8x128xf32>
    %68 = arith.addf %64, %67 : vector<8x128xf32>
    %69 = vector.extract_strided_slice %63 {offsets = [0, 1], sizes = [8, 1], strides = [1, 1]} : vector<8x128xf32> to vector<8x1xf32>
    %70 = vector.broadcast %69 : vector<8x1xf32> to vector<8x128xf32>
    %71 = arith.mulf %70, %12 : vector<8x128xf32>
    %72 = arith.addf %68, %71 : vector<8x128xf32>
    %73 = arith.negf %72 : vector<8x128xf32>
    %74 = math.exp %73 : vector<8x128xf32>
    %cst_11 = arith.constant 1.000000e+00 : f32
    %75 = vector.broadcast %cst_11 : f32 to vector<8x128xf32>
    %76 = arith.addf %75, %74 : vector<8x128xf32>
    %77 = arith.divf %75, %76 : vector<8x128xf32>
    %78 = math.tanh %72 : vector<8x128xf32>
    %79 = arith.select %15, %77, %78 : vector<8x128xi1>, vector<8x128xf32>
    %c64_i32_12 = arith.constant 64 : i32
    %80 = tpu.dynamic_rotate %79 by %c64_i32_12 dim 1 : vector<8x128xf32>, i32 -> vector<8x128xf32>
    %81 = arith.mulf %79, %80 : vector<8x128xf32>
    %c32_i32_13 = arith.constant 32 : i32
    %82 = tpu.dynamic_rotate %81 by %c32_i32_13 dim 1 : vector<8x128xf32>, i32 -> vector<8x128xf32>
    %83 = arith.mulf %79, %61 : vector<8x128xf32>
    %84 = arith.addf %83, %82 : vector<8x128xf32>
    %85 = math.tanh %84 : vector<8x128xf32>
    %86 = arith.mulf %80, %85 : vector<8x128xf32>
    %87 = vector.extract_strided_slice %6 {offsets = [24, 0], sizes = [8, 128], strides = [1, 1]} : vector<64x128xf32> to vector<8x128xf32>
    %88 = vector.extract_strided_slice %86 {offsets = [0, 0], sizes = [8, 1], strides = [1, 1]} : vector<8x128xf32> to vector<8x1xf32>
    %89 = vector.broadcast %88 : vector<8x1xf32> to vector<8x128xf32>
    %90 = arith.mulf %89, %9 : vector<8x128xf32>
    %91 = arith.addf %87, %90 : vector<8x128xf32>
    %92 = vector.extract_strided_slice %86 {offsets = [0, 1], sizes = [8, 1], strides = [1, 1]} : vector<8x128xf32> to vector<8x1xf32>
    %93 = vector.broadcast %92 : vector<8x1xf32> to vector<8x128xf32>
    %94 = arith.mulf %93, %12 : vector<8x128xf32>
    %95 = arith.addf %91, %94 : vector<8x128xf32>
    %96 = arith.negf %95 : vector<8x128xf32>
    %97 = math.exp %96 : vector<8x128xf32>
    %cst_14 = arith.constant 1.000000e+00 : f32
    %98 = vector.broadcast %cst_14 : f32 to vector<8x128xf32>
    %99 = arith.addf %98, %97 : vector<8x128xf32>
    %100 = arith.divf %98, %99 : vector<8x128xf32>
    %101 = math.tanh %95 : vector<8x128xf32>
    %102 = arith.select %15, %100, %101 : vector<8x128xi1>, vector<8x128xf32>
    %c64_i32_15 = arith.constant 64 : i32
    %103 = tpu.dynamic_rotate %102 by %c64_i32_15 dim 1 : vector<8x128xf32>, i32 -> vector<8x128xf32>
    %104 = arith.mulf %102, %103 : vector<8x128xf32>
    %c32_i32_16 = arith.constant 32 : i32
    %105 = tpu.dynamic_rotate %104 by %c32_i32_16 dim 1 : vector<8x128xf32>, i32 -> vector<8x128xf32>
    %106 = arith.mulf %102, %84 : vector<8x128xf32>
    %107 = arith.addf %106, %105 : vector<8x128xf32>
    %108 = math.tanh %107 : vector<8x128xf32>
    %109 = arith.mulf %103, %108 : vector<8x128xf32>
    %110 = vector.extract_strided_slice %6 {offsets = [32, 0], sizes = [8, 128], strides = [1, 1]} : vector<64x128xf32> to vector<8x128xf32>
    %111 = vector.extract_strided_slice %109 {offsets = [0, 0], sizes = [8, 1], strides = [1, 1]} : vector<8x128xf32> to vector<8x1xf32>
    %112 = vector.broadcast %111 : vector<8x1xf32> to vector<8x128xf32>
    %113 = arith.mulf %112, %9 : vector<8x128xf32>
    %114 = arith.addf %110, %113 : vector<8x128xf32>
    %115 = vector.extract_strided_slice %109 {offsets = [0, 1], sizes = [8, 1], strides = [1, 1]} : vector<8x128xf32> to vector<8x1xf32>
    %116 = vector.broadcast %115 : vector<8x1xf32> to vector<8x128xf32>
    %117 = arith.mulf %116, %12 : vector<8x128xf32>
    %118 = arith.addf %114, %117 : vector<8x128xf32>
    %119 = arith.negf %118 : vector<8x128xf32>
    %120 = math.exp %119 : vector<8x128xf32>
    %cst_17 = arith.constant 1.000000e+00 : f32
    %121 = vector.broadcast %cst_17 : f32 to vector<8x128xf32>
    %122 = arith.addf %121, %120 : vector<8x128xf32>
    %123 = arith.divf %121, %122 : vector<8x128xf32>
    %124 = math.tanh %118 : vector<8x128xf32>
    %125 = arith.select %15, %123, %124 : vector<8x128xi1>, vector<8x128xf32>
    %c64_i32_18 = arith.constant 64 : i32
    %126 = tpu.dynamic_rotate %125 by %c64_i32_18 dim 1 : vector<8x128xf32>, i32 -> vector<8x128xf32>
    %127 = arith.mulf %125, %126 : vector<8x128xf32>
    %c32_i32_19 = arith.constant 32 : i32
    %128 = tpu.dynamic_rotate %127 by %c32_i32_19 dim 1 : vector<8x128xf32>, i32 -> vector<8x128xf32>
    %129 = arith.mulf %125, %107 : vector<8x128xf32>
    %130 = arith.addf %129, %128 : vector<8x128xf32>
    %131 = math.tanh %130 : vector<8x128xf32>
    %132 = arith.mulf %126, %131 : vector<8x128xf32>
    %133 = vector.extract_strided_slice %6 {offsets = [40, 0], sizes = [8, 128], strides = [1, 1]} : vector<64x128xf32> to vector<8x128xf32>
    %134 = vector.extract_strided_slice %132 {offsets = [0, 0], sizes = [8, 1], strides = [1, 1]} : vector<8x128xf32> to vector<8x1xf32>
    %135 = vector.broadcast %134 : vector<8x1xf32> to vector<8x128xf32>
    %136 = arith.mulf %135, %9 : vector<8x128xf32>
    %137 = arith.addf %133, %136 : vector<8x128xf32>
    %138 = vector.extract_strided_slice %132 {offsets = [0, 1], sizes = [8, 1], strides = [1, 1]} : vector<8x128xf32> to vector<8x1xf32>
    %139 = vector.broadcast %138 : vector<8x1xf32> to vector<8x128xf32>
    %140 = arith.mulf %139, %12 : vector<8x128xf32>
    %141 = arith.addf %137, %140 : vector<8x128xf32>
    %142 = arith.negf %141 : vector<8x128xf32>
    %143 = math.exp %142 : vector<8x128xf32>
    %cst_20 = arith.constant 1.000000e+00 : f32
    %144 = vector.broadcast %cst_20 : f32 to vector<8x128xf32>
    %145 = arith.addf %144, %143 : vector<8x128xf32>
    %146 = arith.divf %144, %145 : vector<8x128xf32>
    %147 = math.tanh %141 : vector<8x128xf32>
    %148 = arith.select %15, %146, %147 : vector<8x128xi1>, vector<8x128xf32>
    %c64_i32_21 = arith.constant 64 : i32
    %149 = tpu.dynamic_rotate %148 by %c64_i32_21 dim 1 : vector<8x128xf32>, i32 -> vector<8x128xf32>
    %150 = arith.mulf %148, %149 : vector<8x128xf32>
    %c32_i32_22 = arith.constant 32 : i32
    %151 = tpu.dynamic_rotate %150 by %c32_i32_22 dim 1 : vector<8x128xf32>, i32 -> vector<8x128xf32>
    %152 = arith.mulf %148, %130 : vector<8x128xf32>
    %153 = arith.addf %152, %151 : vector<8x128xf32>
    %154 = math.tanh %153 : vector<8x128xf32>
    %155 = arith.mulf %149, %154 : vector<8x128xf32>
    %156 = vector.extract_strided_slice %6 {offsets = [48, 0], sizes = [8, 128], strides = [1, 1]} : vector<64x128xf32> to vector<8x128xf32>
    %157 = vector.extract_strided_slice %155 {offsets = [0, 0], sizes = [8, 1], strides = [1, 1]} : vector<8x128xf32> to vector<8x1xf32>
    %158 = vector.broadcast %157 : vector<8x1xf32> to vector<8x128xf32>
    %159 = arith.mulf %158, %9 : vector<8x128xf32>
    %160 = arith.addf %156, %159 : vector<8x128xf32>
    %161 = vector.extract_strided_slice %155 {offsets = [0, 1], sizes = [8, 1], strides = [1, 1]} : vector<8x128xf32> to vector<8x1xf32>
    %162 = vector.broadcast %161 : vector<8x1xf32> to vector<8x128xf32>
    %163 = arith.mulf %162, %12 : vector<8x128xf32>
    %164 = arith.addf %160, %163 : vector<8x128xf32>
    %165 = arith.negf %164 : vector<8x128xf32>
    %166 = math.exp %165 : vector<8x128xf32>
    %cst_23 = arith.constant 1.000000e+00 : f32
    %167 = vector.broadcast %cst_23 : f32 to vector<8x128xf32>
    %168 = arith.addf %167, %166 : vector<8x128xf32>
    %169 = arith.divf %167, %168 : vector<8x128xf32>
    %170 = math.tanh %164 : vector<8x128xf32>
    %171 = arith.select %15, %169, %170 : vector<8x128xi1>, vector<8x128xf32>
    %c64_i32_24 = arith.constant 64 : i32
    %172 = tpu.dynamic_rotate %171 by %c64_i32_24 dim 1 : vector<8x128xf32>, i32 -> vector<8x128xf32>
    %173 = arith.mulf %171, %172 : vector<8x128xf32>
    %c32_i32_25 = arith.constant 32 : i32
    %174 = tpu.dynamic_rotate %173 by %c32_i32_25 dim 1 : vector<8x128xf32>, i32 -> vector<8x128xf32>
    %175 = arith.mulf %171, %153 : vector<8x128xf32>
    %176 = arith.addf %175, %174 : vector<8x128xf32>
    %177 = math.tanh %176 : vector<8x128xf32>
    %178 = arith.mulf %172, %177 : vector<8x128xf32>
    %179 = vector.extract_strided_slice %6 {offsets = [56, 0], sizes = [8, 128], strides = [1, 1]} : vector<64x128xf32> to vector<8x128xf32>
    %180 = vector.extract_strided_slice %178 {offsets = [0, 0], sizes = [8, 1], strides = [1, 1]} : vector<8x128xf32> to vector<8x1xf32>
    %181 = vector.broadcast %180 : vector<8x1xf32> to vector<8x128xf32>
    %182 = arith.mulf %181, %9 : vector<8x128xf32>
    %183 = arith.addf %179, %182 : vector<8x128xf32>
    %184 = vector.extract_strided_slice %178 {offsets = [0, 1], sizes = [8, 1], strides = [1, 1]} : vector<8x128xf32> to vector<8x1xf32>
    %185 = vector.broadcast %184 : vector<8x1xf32> to vector<8x128xf32>
    %186 = arith.mulf %185, %12 : vector<8x128xf32>
    %187 = arith.addf %183, %186 : vector<8x128xf32>
    %188 = arith.negf %187 : vector<8x128xf32>
    %189 = math.exp %188 : vector<8x128xf32>
    %cst_26 = arith.constant 1.000000e+00 : f32
    %190 = vector.broadcast %cst_26 : f32 to vector<8x128xf32>
    %191 = arith.addf %190, %189 : vector<8x128xf32>
    %192 = arith.divf %190, %191 : vector<8x128xf32>
    %193 = math.tanh %187 : vector<8x128xf32>
    %194 = arith.select %15, %192, %193 : vector<8x128xi1>, vector<8x128xf32>
    %c64_i32_27 = arith.constant 64 : i32
    %195 = tpu.dynamic_rotate %194 by %c64_i32_27 dim 1 : vector<8x128xf32>, i32 -> vector<8x128xf32>
    %196 = arith.mulf %194, %195 : vector<8x128xf32>
    %c32_i32_28 = arith.constant 32 : i32
    %197 = tpu.dynamic_rotate %196 by %c32_i32_28 dim 1 : vector<8x128xf32>, i32 -> vector<8x128xf32>
    %198 = arith.mulf %194, %176 : vector<8x128xf32>
    %199 = arith.addf %198, %197 : vector<8x128xf32>
    %200 = math.tanh %199 : vector<8x128xf32>
    %201 = arith.mulf %195, %200 : vector<8x128xf32>
    %c24 = arith.constant 24 : index
    %c0_29 = arith.constant 0 : index
    %202 = vector.load %arg1[%c24, %c0_29] : memref<280x128xf32, #tpu.memory_space<vmem>>, vector<128x128xf32>
    %c17 = arith.constant 17 : index
    %c0_30 = arith.constant 0 : index
    %203 = vector.load %arg1[%c17, %c0_30] : memref<280x128xf32, #tpu.memory_space<vmem>>, vector<1x128xf32>
    %c152 = arith.constant 152 : index
    %c0_31 = arith.constant 0 : index
    %204 = vector.load %arg1[%c152, %c0_31] : memref<280x128xf32, #tpu.memory_space<vmem>>, vector<128x128xf32>
    %c18 = arith.constant 18 : index
    %c0_32 = arith.constant 0 : index
    %205 = vector.load %arg1[%c18, %c0_32] : memref<280x128xf32, #tpu.memory_space<vmem>>, vector<1x128xf32>
    %cst_33 = arith.constant 0.000000e+00 : f32
    %206 = vector.broadcast %cst_33 : f32 to vector<8x128xf32>
    %207 = arith.maximumf %201, %206 : vector<8x128xf32>
    %cst_34 = arith.constant dense<0.000000e+00> : vector<8x128xf32>
    %208 = tpu.matmul %207, %202, %cst_34 {dimension_numbers = #tpu.dot_dimension_numbers<[1], [0], [0], [1], [0, 0, 1, 1], [], []>} : vector<8x128xf32>, vector<128x128xf32>, vector<8x128xf32> -> vector<8x128xf32>
    %209 = vector.broadcast %203 : vector<1x128xf32> to vector<8x128xf32>
    %210 = arith.addf %208, %209 : vector<8x128xf32>
    %cst_35 = arith.constant 0.000000e+00 : f32
    %211 = vector.broadcast %cst_35 : f32 to vector<8x128xf32>
    %212 = arith.maximumf %210, %211 : vector<8x128xf32>
    %cst_36 = arith.constant dense<0.000000e+00> : vector<8x128xf32>
    %213 = tpu.matmul %212, %204, %cst_36 {dimension_numbers = #tpu.dot_dimension_numbers<[1], [0], [0], [1], [0, 0, 1, 1], [], []>} : vector<8x128xf32>, vector<128x128xf32>, vector<8x128xf32> -> vector<8x128xf32>
    %214 = vector.broadcast %205 : vector<1x128xf32> to vector<8x128xf32>
    %215 = arith.addf %213, %214 : vector<8x128xf32>
    %c0_37 = arith.constant 0 : index
    %c0_38 = arith.constant 0 : index
    %216 = vector.load %arg2[%c0_37, %c0_38] : memref<8x128xf32, #tpu.memory_space<vmem>>, vector<8x128xf32>
    tpu.vector_store %arg2[%c0_37, %c0_38], %215 {strides = array<i32>} : memref<8x128xf32, #tpu.memory_space<vmem>>, vector<8x128xf32>,
    return
  }
}

</mosaic_0001>

<llo_original>
// kernel: forward.1
$region0: #{forward.1}
  #allocation0 [shape = 'u32[]', space=smem, size = 0x4, offset = 0x4, fixed_abs, tag = 'smem constant byte address 0x4 - core index']
  #allocation1 [shape = 'u32[144,128]{1,0:T(1,128)}', space=vmem, size = 0x12000, scoped, tag = 'internal scratch']
  %s0 = inlined_call_operand.vmem [shape: f32[64,5], index: 0, kind: input, shape index: {}]
  %s1 = inlined_call_operand.hbm [shape: f32[280,128], index: 1, kind: input, shape index: {}]
  %s2 = inlined_call_operand.vmem [shape: f32[8,128], index: 2, kind: output, shape index: {}]
  %s3 = sld [smem:[#allocation0]]
  $region22: #{forward.1} parent=0
    _
  %s5 = ssub.s32 1, %s3
  %s6 = scalar_select 0, %s5, %s3
  $region1: #{forward.1} parent=0
    #allocation2 [shape = 'u8[143360]{0}', space=vmem, size = 0x23000, scoped, tag = 'input window, operand 1, single buffered']
    #allocation3 [shape = 's32[1]{0}', space=sflag, size = 0x4, scoped, tag = 'scoped memory for forward.1']
    %7 = vsyncpa [#allocation3], 0
    // Predicated region
    $region2: #{forward.1} parent=1 // pred_check
      _
    $region3: #{forward.1} parent=1 // pred_check_branch
      %9 = sbr.rel (0) target = $region5
    $region4: #{forward.1} parent=1 // pred_region
      _
    $region5: #{forward.1} parent=1 // pred_fallthru
      _
    // Predicated region
    $region6: #{forward.1} parent=1 // pred_check
      _
    $region7: #{forward.1} parent=1 // pred_check_branch
      %11 = sbr.rel (0) target = $region9
    $region8: #{forward.1} parent=1 // pred_region
      %s13 = ssub.s32 4480, 4480
      %14 = vsyncadd [#allocation3], %s13
      %s15 = sshll.u32 [#allocation2], 4
      %s16 = int_to_ptr.vmem [resolvable:$true] %s15
      %21 = dma.hbm_to_vmem [thread:$0]  %s1, 4480, %s16, [#allocation3], 128, 128, 8
    $region9: #{forward.1} parent=1 // pred_fallthru
      _
    // Predicated region
    $region10: #{forward.1} parent=1 // pred_check
      _
    $region11: #{forward.1} parent=1 // pred_check_branch
      %23 = sbr.rel (0) target = $region13
    $region12: #{forward.1} parent=1 // pred_region
      %24 = dma.done [#allocation3], 4480
    $region13: #{forward.1} parent=1 // pred_fallthru
      _
    %v25 = vld [vmem:[#allocation2] sm:$0x1f]
    %v26 = vld [vmem:[#allocation2 + $0x8] sm:$0x3]
    %v27 = vld [vmem:[#allocation2 + $0x10] sm:$0x1]
    %v28 = vld [vmem:[%s0] sm:$0xff]
    %v29 = vld [vmem:[%s0 + $0x8] sm:$0xff]
    %v30 = vld [vmem:[%s0 + $0x10] sm:$0xff]
    %v31 = vld [vmem:[%s0 + $0x18] sm:$0xff]
    %v32 = vld [vmem:[%s0 + $0x20] sm:$0xff]
    %v33 = vld [vmem:[%s0 + $0x28] sm:$0xff]
    %v34 = vld [vmem:[%s0 + $0x30] sm:$0xff]
    %v35 = vld [vmem:[%s0 + $0x38] sm:$0xff]
    %v36 = vlaneseq
    %v37 = vshrl.u32 %v36, 7
    %v38 = vsub.s32 0, %v37
    %v39 = vrot.slane %v27, %v38
    %vm40 = vcmask 39936
    %v42 = vsel %vm40, %v28, 0
    %v45 = vsel %vm40, %v29, 0
    %v48 = vsel %vm40, %v30, 0
    %v51 = vsel %vm40, %v31, 0
    %v54 = vsel %vm40, %v32, 0
    %v57 = vsel %vm40, %v33, 0
    %v60 = vsel %vm40, %v34, 0
    %v63 = vsel %vm40, %v35, 0
    %vm65 = vcmask 1044480
    %v67 = vsel %vm65, %v25, 0
    %69 = vmatprep.subr.mxu0 0.0
    %70 = vmatpush1.msra.mxu0 %v67
    %71 = vmatprep.subr.mxu0 0.0
    %72 = vmatpush1.msra.mxu0 0.0
    %73 = vmatprep.subr.mxu0 0.0
    %74 = vmatpush1.msra.mxu0 0.0
    %75 = vmatprep.subr.mxu0 0.0
    %76 = vmatpush1.msra.mxu0 0.0
    %77 = vmatprep.subr.mxu0 0.0
    %78 = vmatpush1.msra.mxu0 0.0
    %79 = vmatprep.subr.mxu0 0.0
    %80 = vmatpush1.msra.mxu0 0.0
    %81 = vmatprep.subr.mxu0 0.0
    %82 = vmatpush1.msra.mxu0 0.0
    %83 = vmatprep.subr.mxu0 0.0
    %84 = vmatpush1.msra.mxu0 0.0
    %85 = vmatprep.subr.mxu0 0.0
    %86 = vmatpush1.msra.mxu0 0.0
    %87 = vmatprep.subr.mxu0 0.0
    %88 = vmatpush1.msra.mxu0 0.0
    %89 = vmatprep.subr.mxu0 0.0
    %90 = vmatpush1.msra.mxu0 0.0
    %91 = vmatprep.subr.mxu0 0.0
    %92 = vmatpush1.msra.mxu0 0.0
    %93 = vmatprep.subr.mxu0 0.0
    %94 = vmatpush1.msra.mxu0 0.0
    %95 = vmatprep.subr.mxu0 0.0
    %96 = vmatpush1.msra.mxu0 0.0
    %97 = vmatprep.subr.mxu0 0.0
    %98 = vmatpush1.msra.mxu0 0.0
    %99 = vmatprep.subr.mxu0 0.0
    %100 = vmatpush1.msra.mxu0 0.0
    %101 = vmatprep.subr.mxu0 0.0
    %102 = vmatpush1.msra.mxu0 0.0
    %103 = vmatprep.subr.mxu0 0.0
    %104 = vmatpush1.msra.mxu0 0.0
    %105 = vmatprep.subr.mxu0 0.0
    %106 = vmatpush1.msra.mxu0 0.0
    %107 = vmatprep.subr.mxu0 0.0
    %108 = vmatpush1.msra.mxu0 0.0
    %109 = vmatprep.subr.mxu0 0.0
    %110 = vmatpush1.msra.mxu0 0.0
    %111 = vmatprep.subr.mxu0 0.0
    %112 = vmatpush1.msra.mxu0 0.0
    %113 = vmatprep.subr.mxu0 0.0
    %114 = vmatpush1.msra.mxu0 0.0
    %115 = vmatprep.subr.mxu0 0.0
    %116 = vmatpush1.msra.mxu0 0.0
    %117 = vmatprep.subr.mxu0 0.0
    %118 = vmatpush1.msra.mxu0 0.0
    %119 = vmatprep.subr.mxu0 0.0
    %120 = vmatpush1.msra.mxu0 0.0
    %121 = vmatprep.subr.mxu0 0.0
    %122 = vmatpush1.msra.mxu0 0.0
    %123 = vmatprep.subr.mxu0 0.0
    %124 = vmatpush1.msra.mxu0 0.0
    %125 = vmatprep.subr.mxu0 0.0
    %126 = vmatpush1.msra.mxu0 0.0
    %127 = vmatprep.subr.mxu0 0.0
    %128 = vmatpush1.msra.mxu0 0.0
    %129 = vmatprep.subr.mxu0 0.0
    %130 = vmatpush1.msra.mxu0 0.0
    %131 = vmatprep.subr.mxu0 0.0
    %132 = vmatpush1.msra.mxu0 0.0
    %133 = vmatprep.mubr.f32.mxu0 0.0
    %134 = vmatmul.mubr.f32.gmra.mrb[0].mxu0 %v42
    %v135 = vpop.f32.mrb[0].mxu0
    %v136 = vadd.f32 %v39, %v135
    %v137 = vpop.f32.mrb[0].mxu0
    %138 = vmatprep.mubr.f32.mxu0 0.0
    %139 = vmatmul.mubr.f32.gmra.mrb[0].mxu0 %v45
    %v140 = vpop.f32.mrb[0].mxu0
    %v141 = vadd.f32 %v39, %v140
    %v142 = vpop.f32.mrb[0].mxu0
    %143 = vmatprep.mubr.f32.mxu0 0.0
    %144 = vmatmul.mubr.f32.gmra.mrb[0].mxu0 %v48
    %v145 = vpop.f32.mrb[0].mxu0
    %v146 = vadd.f32 %v39, %v145
    %v147 = vpop.f32.mrb[0].mxu0
    %148 = vmatprep.mubr.f32.mxu0 0.0
    %149 = vmatmul.mubr.f32.gmra.mrb[0].mxu0 %v51
    %v150 = vpop.f32.mrb[0].mxu0
    %v151 = vadd.f32 %v39, %v150
    %v152 = vpop.f32.mrb[0].mxu0
    %153 = vmatprep.mubr.f32.mxu0 0.0
    %154 = vmatmul.mubr.f32.gmra.mrb[0].mxu0 %v54
    %v155 = vpop.f32.mrb[0].mxu0
    %v156 = vadd.f32 %v39, %v155
    %v157 = vpop.f32.mrb[0].mxu0
    %158 = vmatprep.mubr.f32.mxu0 0.0
    %159 = vmatmul.mubr.f32.gmra.mrb[0].mxu0 %v57
    %v160 = vpop.f32.mrb[0].mxu0
    %v161 = vadd.f32 %v39, %v160
    %v162 = vpop.f32.mrb[0].mxu0
    %163 = vmatprep.mubr.f32.mxu0 0.0
    %164 = vmatmul.mubr.f32.gmra.mrb[0].mxu0 %v60
    %v165 = vpop.f32.mrb[0].mxu0
    %v166 = vadd.f32 %v39, %v165
    %v167 = vpop.f32.mrb[0].mxu0
    %168 = vmatprep.mubr.f32.mxu0 0.0
    %169 = vmatmul.mubr.f32.gmra.mrb[0].mxu0 %v63
    %v170 = vpop.f32.mrb[0].mxu0
    %v171 = vadd.f32 %v39, %v170
    %v172 = vpop.f32.mrb[0].mxu0
    %173 = vdwg.mxu0
    %v174 = vlaneseq
    %v175 = vshrl.u32 %v174, 7
    %v176 = vsub.s32 0, %v175
    %v177 = vrot.slane %v26, %v176
    %v178 = vlaneseq
    %v179 = vshrl.u32 %v178, 7
    %v180 = vsub.s32 1, %v179
    %v181 = vrot.slane %v26, %v180
    %v182 = vlaneseq
    %v183 = vand.u32 %v182, 127
    %vm184 = vcmp.lt.s32.totalorder %v183, 96
    %v185 = vmul.f32 %v177, 0.0
    %v186 = vadd.f32 %v136, %v185
    %v187 = vmul.f32 %v181, 0.0
    %v188 = vadd.f32 %v186, %v187
    %v189 = vxor.u32 %v188, 2147483648
    %v190 = vmul.f32 %v189, 1.442695
    %v191 = vpow.pop %v190
    %v192 = vadd.f32 %v191, 1.0
    %v193 = vrcp.pop %v192
    %v194 = vmul.f32 1.0, %v193
    %v195 = vtanh.pop %v188
    %v196 = vsel %vm184, %v194, %v195
    %197 = vrot.lane.b32.xlu0 %v196, 64
    %v198 = vpop.permute.xlu0 %197
    %v199 = vmul.f32 %v196, %v198
    %200 = vrot.lane.b32.xlu0 %v199, 32
    %v201 = vpop.permute.xlu0 %200
    %v202 = vmul.f32 %v196, 0.0
    %v203 = vadd.f32 %v202, %v201
    %v204 = vtanh.pop %v203
    %v205 = vmul.f32 %v198, %v204
    %207 = vset.pattern.permute.xlu0 0
    %208 = vperm.xlu0 %207, %v205
    %v209 = vpop.permute.xlu0 %208
    %v211 = vmul.f32 %v209, %v177
    %v212 = vadd.f32 %v141, %v211
    %213 = vset.pattern.permute.xlu0 1
    %214 = vperm.xlu0 %213, %v205
    %v215 = vpop.permute.xlu0 %214
    %v217 = vmul.f32 %v215, %v181
    %v218 = vadd.f32 %v212, %v217
    %v219 = vxor.u32 %v218, 2147483648
    %v220 = vmul.f32 %v219, 1.442695
    %v221 = vpow.pop %v220
    %v222 = vadd.f32 %v221, 1.0
    %v223 = vrcp.pop %v222
    %v224 = vmul.f32 1.0, %v223
    %v225 = vtanh.pop %v218
    %v226 = vsel %vm184, %v224, %v225
    %227 = vrot.lane.b32.xlu0 %v226, 64
    %v228 = vpop.permute.xlu0 %227
    %v229 = vmul.f32 %v226, %v228
    %230 = vrot.lane.b32.xlu0 %v229, 32
    %v231 = vpop.permute.xlu0 %230
    %v232 = vmul.f32 %v226, %v203
    %v233 = vadd.f32 %v232, %v231
    %v234 = vtanh.pop %v233
    %v235 = vmul.f32 %v228, %v234
    %237 = vset.pattern.permute.xlu0 0
    %238 = vperm.xlu0 %237, %v235
    %v239 = vpop.permute.xlu0 %238
    %v241 = vmul.f32 %v239, %v177
    %v242 = vadd.f32 %v146, %v241
    %243 = vset.pattern.permute.xlu0 1
    %244 = vperm.xlu0 %243, %v235
    %v245 = vpop.permute.xlu0 %244
    %v247 = vmul.f32 %v245, %v181
    %v248 = vadd.f32 %v242, %v247
    %v249 = vxor.u32 %v248, 2147483648
    %v250 = vmul.f32 %v249, 1.442695
    %v251 = vpow.pop %v250
    %v252 = vadd.f32 %v251, 1.0
    %v253 = vrcp.pop %v252
    %v254 = vmul.f32 1.0, %v253
    %v255 = vtanh.pop %v248
    %v256 = vsel %vm184, %v254, %v255
    %257 = vrot.lane.b32.xlu0 %v256, 64
    %v258 = vpop.permute.xlu0 %257
    %v259 = vmul.f32 %v256, %v258
    %260 = vrot.lane.b32.xlu0 %v259, 32
    %v261 = vpop.permute.xlu0 %260
    %v262 = vmul.f32 %v256, %v233
    %v263 = vadd.f32 %v262, %v261
    %v264 = vtanh.pop %v263
    %v265 = vmul.f32 %v258, %v264
    %267 = vset.pattern.permute.xlu0 0
    %268 = vperm.xlu0 %267, %v265
    %v269 = vpop.permute.xlu0 %268
    %v271 = vmul.f32 %v269, %v177
    %v272 = vadd.f32 %v151, %v271
    %273 = vset.pattern.permute.xlu0 1
    %274 = vperm.xlu0 %273, %v265
    %v275 = vpop.permute.xlu0 %274
    %v277 = vmul.f32 %v275, %v181
    %v278 = vadd.f32 %v272, %v277
    %v279 = vxor.u32 %v278, 2147483648
    %v280 = vmul.f32 %v279, 1.442695
    %v281 = vpow.pop %v280
    %v282 = vadd.f32 %v281, 1.0
    %v283 = vrcp.pop %v282
    %v284 = vmul.f32 1.0, %v283
    %v285 = vtanh.pop %v278
    %v286 = vsel %vm184, %v284, %v285
    %287 = vrot.lane.b32.xlu0 %v286, 64
    %v288 = vpop.permute.xlu0 %287
    %v289 = vmul.f32 %v286, %v288
    %290 = vrot.lane.b32.xlu0 %v289, 32
    %v291 = vpop.permute.xlu0 %290
    %v292 = vmul.f32 %v286, %v263
    %v293 = vadd.f32 %v292, %v291
    %v294 = vtanh.pop %v293
    %v295 = vmul.f32 %v288, %v294
    %297 = vset.pattern.permute.xlu0 0
    %298 = vperm.xlu0 %297, %v295
    %v299 = vpop.permute.xlu0 %298
    %v301 = vmul.f32 %v299, %v177
    %v302 = vadd.f32 %v156, %v301
    %303 = vset.pattern.permute.xlu0 1
    %304 = vperm.xlu0 %303, %v295
    %v305 = vpop.permute.xlu0 %304
    %v307 = vmul.f32 %v305, %v181
    %v308 = vadd.f32 %v302, %v307
    %v309 = vxor.u32 %v308, 2147483648
    %v310 = vmul.f32 %v309, 1.442695
    %v311 = vpow.pop %v310
    %v312 = vadd.f32 %v311, 1.0
    %v313 = vrcp.pop %v312
    %v314 = vmul.f32 1.0, %v313
    %v315 = vtanh.pop %v308
    %v316 = vsel %vm184, %v314, %v315
    %317 = vrot.lane.b32.xlu0 %v316, 64
    %v318 = vpop.permute.xlu0 %317
    %v319 = vmul.f32 %v316, %v318
    %320 = vrot.lane.b32.xlu0 %v319, 32
    %v321 = vpop.permute.xlu0 %320
    %v322 = vmul.f32 %v316, %v293
    %v323 = vadd.f32 %v322, %v321
    %v324 = vtanh.pop %v323
    %v325 = vmul.f32 %v318, %v324
    %327 = vset.pattern.permute.xlu0 0
    %328 = vperm.xlu0 %327, %v325
    %v329 = vpop.permute.xlu0 %328
    %v331 = vmul.f32 %v329, %v177
    %v332 = vadd.f32 %v161, %v331
    %333 = vset.pattern.permute.xlu0 1
    %334 = vperm.xlu0 %333, %v325
    %v335 = vpop.permute.xlu0 %334
    %v337 = vmul.f32 %v335, %v181
    %v338 = vadd.f32 %v332, %v337
    %v339 = vxor.u32 %v338, 2147483648
    %v340 = vmul.f32 %v339, 1.442695
    %v341 = vpow.pop %v340
    %v342 = vadd.f32 %v341, 1.0
    %v343 = vrcp.pop %v342
    %v344 = vmul.f32 1.0, %v343
    %v345 = vtanh.pop %v338
    %v346 = vsel %vm184, %v344, %v345
    %347 = vrot.lane.b32.xlu0 %v346, 64
    %v348 = vpop.permute.xlu0 %347
    %v349 = vmul.f32 %v346, %v348
    %350 = vrot.lane.b32.xlu0 %v349, 32
    %v351 = vpop.permute.xlu0 %350
    %v352 = vmul.f32 %v346, %v323
    %v353 = vadd.f32 %v352, %v351
    %v354 = vtanh.pop %v353
    %v355 = vmul.f32 %v348, %v354
    %357 = vset.pattern.permute.xlu0 0
    %358 = vperm.xlu0 %357, %v355
    %v359 = vpop.permute.xlu0 %358
    %v361 = vmul.f32 %v359, %v177
    %v362 = vadd.f32 %v166, %v361
    %363 = vset.pattern.permute.xlu0 1
    %364 = vperm.xlu0 %363, %v355
    %v365 = vpop.permute.xlu0 %364
    %v367 = vmul.f32 %v365, %v181
    %v368 = vadd.f32 %v362, %v367
    %v369 = vxor.u32 %v368, 2147483648
    %v370 = vmul.f32 %v369, 1.442695
    %v371 = vpow.pop %v370
    %v372 = vadd.f32 %v371, 1.0
    %v373 = vrcp.pop %v372
    %v374 = vmul.f32 1.0, %v373
    %v375 = vtanh.pop %v368
    %v376 = vsel %vm184, %v374, %v375
    %377 = vrot.lane.b32.xlu0 %v376, 64
    %v378 = vpop.permute.xlu0 %377
    %v379 = vmul.f32 %v376, %v378
    %380 = vrot.lane.b32.xlu0 %v379, 32
    %v381 = vpop.permute.xlu0 %380
    %v382 = vmul.f32 %v376, %v353
    %v383 = vadd.f32 %v382, %v381
    %v384 = vtanh.pop %v383
    %v385 = vmul.f32 %v378, %v384
    %387 = vset.pattern.permute.xlu0 0
    %388 = vperm.xlu0 %387, %v385
    %v389 = vpop.permute.xlu0 %388
    %v391 = vmul.f32 %v389, %v177
    %v392 = vadd.f32 %v171, %v391
    %393 = vset.pattern.permute.xlu0 1
    %394 = vperm.xlu0 %393, %v385
    %v395 = vpop.permute.xlu0 %394
    %v397 = vmul.f32 %v395, %v181
    %v398 = vadd.f32 %v392, %v397
    %v399 = vxor.u32 %v398, 2147483648
    %v400 = vmul.f32 %v399, 1.442695
    %v401 = vpow.pop %v400
    %v402 = vadd.f32 %v401, 1.0
    %v403 = vrcp.pop %v402
    %v404 = vmul.f32 1.0, %v403
    %v405 = vtanh.pop %v398
    %v406 = vsel %vm184, %v404, %v405
    %407 = vrot.lane.b32.xlu0 %v406, 64
    %v408 = vpop.permute.xlu0 %407
    %v409 = vmul.f32 %v406, %v408
    %410 = vrot.lane.b32.xlu0 %v409, 32
    %v411 = vpop.permute.xlu0 %410
    %v412 = vmul.f32 %v406, %v383
    %v413 = vadd.f32 %v412, %v411
    %v414 = vtanh.pop %v413
    %v415 = vmul.f32 %v408, %v414
    %v416 = vld [vmem:[#allocation2 + $0x18] sm:$0xff]
    %v417 = vld [vmem:[#allocation2 + $0x20] sm:$0xff]
    %v418 = vld [vmem:[#allocation2 + $0x28] sm:$0xff]
    %v419 = vld [vmem:[#allocation2 + $0x30] sm:$0xff]
    %v420 = vld [vmem:[#allocation2 + $0x38] sm:$0xff]
    %v421 = vld [vmem:[#allocation2 + $0x40] sm:$0xff]
    %v422 = vld [vmem:[#allocation2 + $0x48] sm:$0xff]
    %v423 = vld [vmem:[#allocation2 + $0x50] sm:$0xff]
    %v424 = vld [vmem:[#allocation2 + $0x58] sm:$0xff]
    %v425 = vld [vmem:[#allocation2 + $0x60] sm:$0xff]
    %v426 = vld [vmem:[#allocation2 + $0x68] sm:$0xff]
    %v427 = vld [vmem:[#allocation2 + $0x70] sm:$0xff]
    %v428 = vld [vmem:[#allocation2 + $0x78] sm:$0xff]
    %v429 = vld [vmem:[#allocation2 + $0x80] sm:$0xff]
    %v430 = vld [vmem:[#allocation2 + $0x88] sm:$0xff]
    %v431 = vld [vmem:[#allocation2 + $0x90] sm:$0xff]
    %v432 = vld [vmem:[#allocation2 + $0x11] sm:$0x1]
    %v433 = vld [vmem:[#allocation2 + $0x98] sm:$0xff]
    %v434 = vld [vmem:[#allocation2 + $0xa0] sm:$0xff]
    %v435 = vld [vmem:[#allocation2 + $0xa8] sm:$0xff]
    %v436 = vld [vmem:[#allocation2 + $0xb0] sm:$0xff]
    %v437 = vld [vmem:[#allocation2 + $0xb8] sm:$0xff]
    %v438 = vld [vmem:[#allocation2 + $0xc0] sm:$0xff]
    %v439 = vld [vmem:[#allocation2 + $0xc8] sm:$0xff]
    %v440 = vld [vmem:[#allocation2 + $0xd0] sm:$0xff]
    %v441 = vld [vmem:[#allocation2 + $0xd8] sm:$0xff]
    %v442 = vld [vmem:[#allocation2 + $0xe0] sm:$0xff]
    %v443 = vld [vmem:[#allocation2 + $0xe8] sm:$0xff]
    %v444 = vld [vmem:[#allocation2 + $0xf0] sm:$0xff]
    %v445 = vld [vmem:[#allocation2 + $0xf8] sm:$0xff]
    %v446 = vld [vmem:[#allocation2 + $0x100] sm:$0xff]
    %v447 = vld [vmem:[#allocation2 + $0x108] sm:$0xff]
    %v448 = vld [vmem:[#allocation2 + $0x110] sm:$0xff]
    %v449 = vld [vmem:[#allocation2 + $0x12] sm:$0x1]
    %v450 = vmax.f32 %v415, 0.0
    %v451 = vlaneseq
    %v452 = vshrl.u32 %v451, 7
    %v453 = vsub.s32 0, %v452
    %v454 = vrot.slane %v432, %v453
    %455 = vmatprep.subr.mxu0 0.0
    %456 = vmatpush1.msra.mxu0 %v416
    %457 = vmatprep.subr.mxu0 0.0
    %458 = vmatpush1.msra.mxu0 %v417
    %459 = vmatprep.subr.mxu0 0.0
    %460 = vmatpush1.msra.mxu0 %v418
    %461 = vmatprep.subr.mxu0 0.0
    %462 = vmatpush1.msra.mxu0 %v419
    %463 = vmatprep.subr.mxu0 0.0
    %464 = vmatpush1.msra.mxu0 %v420
    %465 = vmatprep.subr.mxu0 0.0
    %466 = vmatpush1.msra.mxu0 %v421
    %467 = vmatprep.subr.mxu0 0.0
    %468 = vmatpush1.msra.mxu0 %v422
    %469 = vmatprep.subr.mxu0 0.0
    %470 = vmatpush1.msra.mxu0 %v423
    %471 = vmatprep.subr.mxu0 0.0
    %472 = vmatpush1.msra.mxu0 %v424
    %473 = vmatprep.subr.mxu0 0.0
    %474 = vmatpush1.msra.mxu0 %v425
    %475 = vmatprep.subr.mxu0 0.0
    %476 = vmatpush1.msra.mxu0 %v426
    %477 = vmatprep.subr.mxu0 0.0
    %478 = vmatpush1.msra.mxu0 %v427
    %479 = vmatprep.subr.mxu0 0.0
    %480 = vmatpush1.msra.mxu0 %v428
    %481 = vmatprep.subr.mxu0 0.0
    %482 = vmatpush1.msra.mxu0 %v429
    %483 = vmatprep.subr.mxu0 0.0
    %484 = vmatpush1.msra.mxu0 %v430
    %485 = vmatprep.subr.mxu0 0.0
    %486 = vmatpush1.msra.mxu0 %v431
    %487 = vmatprep.subr.mxu0 0.0
    %488 = vmatpush1.msra.mxu0 0.0
    %489 = vmatprep.subr.mxu0 0.0
    %490 = vmatpush1.msra.mxu0 0.0
    %491 = vmatprep.subr.mxu0 0.0
    %492 = vmatpush1.msra.mxu0 0.0
    %493 = vmatprep.subr.mxu0 0.0
    %494 = vmatpush1.msra.mxu0 0.0
    %495 = vmatprep.subr.mxu0 0.0
    %496 = vmatpush1.msra.mxu0 0.0
    %497 = vmatprep.subr.mxu0 0.0
    %498 = vmatpush1.msra.mxu0 0.0
    %499 = vmatprep.subr.mxu0 0.0
    %500 = vmatpush1.msra.mxu0 0.0
    %501 = vmatprep.subr.mxu0 0.0
    %502 = vmatpush1.msra.mxu0 0.0
    %503 = vmatprep.subr.mxu0 0.0
    %504 = vmatpush1.msra.mxu0 0.0
    %505 = vmatprep.subr.mxu0 0.0
    %506 = vmatpush1.msra.mxu0 0.0
    %507 = vmatprep.subr.mxu0 0.0
    %508 = vmatpush1.msra.mxu0 0.0
    %509 = vmatprep.subr.mxu0 0.0
    %510 = vmatpush1.msra.mxu0 0.0
    %511 = vmatprep.subr.mxu0 0.0
    %512 = vmatpush1.msra.mxu0 0.0
    %513 = vmatprep.subr.mxu0 0.0
    %514 = vmatpush1.msra.mxu0 0.0
    %515 = vmatprep.subr.mxu0 0.0
    %516 = vmatpush1.msra.mxu0 0.0
    %517 = vmatprep.subr.mxu0 0.0
    %518 = vmatpush1.msra.mxu0 0.0
    %519 = vmatprep.mubr.f32.mxu0 0.0
    %520 = vmatmul.mubr.f32.gmra.mrb[0].mxu0 %v450
    %v521 = vpop.f32.mrb[0].mxu0
    %v522 = vadd.f32 %v454, %v521
    %v523 = vpop.f32.mrb[0].mxu0
    %524 = vdwg.mxu0
    %v525 = vmax.f32 %v522, 0.0
    %v526 = vlaneseq
    %v527 = vshrl.u32 %v526, 7
    %v528 = vsub.s32 0, %v527
    %v529 = vrot.slane %v449, %v528
    %530 = vmatprep.subr.mxu0 0.0
    %531 = vmatpush1.msra.mxu0 %v433
    %532 = vmatprep.subr.mxu0 0.0
    %533 = vmatpush1.msra.mxu0 %v434
    %534 = vmatprep.subr.mxu0 0.0
    %535 = vmatpush1.msra.mxu0 %v435
    %536 = vmatprep.subr.mxu0 0.0
    %537 = vmatpush1.msra.mxu0 %v436
    %538 = vmatprep.subr.mxu0 0.0
    %539 = vmatpush1.msra.mxu0 %v437
    %540 = vmatprep.subr.mxu0 0.0
    %541 = vmatpush1.msra.mxu0 %v438
    %542 = vmatprep.subr.mxu0 0.0
    %543 = vmatpush1.msra.mxu0 %v439
    %544 = vmatprep.subr.mxu0 0.0
    %545 = vmatpush1.msra.mxu0 %v440
    %546 = vmatprep.subr.mxu0 0.0
    %547 = vmatpush1.msra.mxu0 %v441
    %548 = vmatprep.subr.mxu0 0.0
    %549 = vmatpush1.msra.mxu0 %v442
    %550 = vmatprep.subr.mxu0 0.0
    %551 = vmatpush1.msra.mxu0 %v443
    %552 = vmatprep.subr.mxu0 0.0
    %553 = vmatpush1.msra.mxu0 %v444
    %554 = vmatprep.subr.mxu0 0.0
    %555 = vmatpush1.msra.mxu0 %v445
    %556 = vmatprep.subr.mxu0 0.0
    %557 = vmatpush1.msra.mxu0 %v446
    %558 = vmatprep.subr.mxu0 0.0
    %559 = vmatpush1.msra.mxu0 %v447
    %560 = vmatprep.subr.mxu0 0.0
    %561 = vmatpush1.msra.mxu0 %v448
    %562 = vmatprep.subr.mxu0 0.0
    %563 = vmatpush1.msra.mxu0 0.0
    %564 = vmatprep.subr.mxu0 0.0
    %565 = vmatpush1.msra.mxu0 0.0
    %566 = vmatprep.subr.mxu0 0.0
    %567 = vmatpush1.msra.mxu0 0.0
    %568 = vmatprep.subr.mxu0 0.0
    %569 = vmatpush1.msra.mxu0 0.0
    %570 = vmatprep.subr.mxu0 0.0
    %571 = vmatpush1.msra.mxu0 0.0
    %572 = vmatprep.subr.mxu0 0.0
    %573 = vmatpush1.msra.mxu0 0.0
    %574 = vmatprep.subr.mxu0 0.0
    %575 = vmatpush1.msra.mxu0 0.0
    %576 = vmatprep.subr.mxu0 0.0
    %577 = vmatpush1.msra.mxu0 0.0
    %578 = vmatprep.subr.mxu0 0.0
    %579 = vmatpush1.msra.mxu0 0.0
    %580 = vmatprep.subr.mxu0 0.0
    %581 = vmatpush1.msra.mxu0 0.0
    %582 = vmatprep.subr.mxu0 0.0
    %583 = vmatpush1.msra.mxu0 0.0
    %584 = vmatprep.subr.mxu0 0.0
    %585 = vmatpush1.msra.mxu0 0.0
    %586 = vmatprep.subr.mxu0 0.0
    %587 = vmatpush1.msra.mxu0 0.0
    %588 = vmatprep.subr.mxu0 0.0
    %589 = vmatpush1.msra.mxu0 0.0
    %590 = vmatprep.subr.mxu0 0.0
    %591 = vmatpush1.msra.mxu0 0.0
    %592 = vmatprep.subr.mxu0 0.0
    %593 = vmatpush1.msra.mxu0 0.0
    %594 = vmatprep.mubr.f32.mxu0 0.0
    %595 = vmatmul.mubr.f32.gmra.mrb[0].mxu0 %v525
    %v596 = vpop.f32.mrb[0].mxu0
    %v597 = vadd.f32 %v529, %v596
    %v598 = vpop.f32.mrb[0].mxu0
    %599 = vdwg.mxu0
    %600 = vst [vmem:[%s2] sm:$0xff] %v597
    // Predicated region
    $region14: #{forward.1} parent=1 // pred_check
      _
    $region15: #{forward.1} parent=1 // pred_check_branch
      %602 = sbr.rel (0) target = $region17
    $region16: #{forward.1} parent=1 // pred_region
      _
    $region17: #{forward.1} parent=1 // pred_fallthru
      _
    // Predicated region
    $region18: #{forward.1} parent=1 // pred_check
      _
    $region19: #{forward.1} parent=1 // pred_check_branch
      %604 = sbr.rel (0) target = $region21
    $region20: #{forward.1} parent=1 // pred_region
      _
    $region21: #{forward.1} parent=1 // pred_fallthru
      _
    %605 = vsyncpa [#allocation3], 1

</llo_original>
